<compile_context>
chip_gen: v7x
topology: tpu7x:2x2x1
jax: 0.10.0
libtpu: 0.0.40
codegen_flags: <defaults>
</compile_context>

<pallas_src>
import functools
import math

import jax
import jax.numpy as jnp
from jax import lax
from jax.experimental import pallas as pl
from jax.experimental.pallas import tpu as pltpu


def _pick_tile(total, candidates=(512, 256, 128)):
    """Largest MXU-friendly tile that evenly divides `total`, else the full dim."""
    for t in candidates:
        if total >= t and total % t == 0:
            return t
    return total


def _mqa_attention_kernel(qmax_ref, qpos_ref, q_ref, k_ref, v_ref, bias_ref,
                          o_ref, m_scr, l_scr, acc_scr,
                          *, causal, tm, tkv, scale):
    # qmax_ref : SMEM (num_m,)  max query position per M-tile (scalar prefetch)
    # qpos_ref : (1, TM, 1)     query position within head, per folded row
    # q_ref    : (1, TM, D)     k_ref/v_ref: (1, TKV, D)
    # bias_ref : (1, 1, TKV)    additive mask bias (0 keep / -FLT_MAX masked)
    kv_idx = pl.program_id(2)

    @pl.when(kv_idx == 0)
    def _init():
        m_scr[...] = jnp.full_like(m_scr, -jnp.inf)
        l_scr[...] = jnp.zeros_like(l_scr)
        acc_scr[...] = jnp.zeros_like(acc_scr)

    def _compute():
        q = q_ref[0]                      # (TM, D)
        k = k_ref[0]                      # (TKV, D)
        bias = bias_ref[0]                # (1, TKV)

        # 'i d, j d -> i j' on the MXU without materializing k.T
        s = lax.dot_general(
            q, k,
            dimension_numbers=(((1,), (1,)), ((), ())),
            preferred_element_type=jnp.float32)       # (TM, TKV)
        s = s * scale + bias

        if causal:
            neg = -jnp.finfo(jnp.float32).max
            qpos = qpos_ref[0]            # (TM, 1) int32
            cols = kv_idx * tkv + lax.broadcasted_iota(jnp.int32, (tm, tkv), 1)
            s = jnp.where(cols > qpos, neg, s)

        # online softmax update
        m_prev = m_scr[...]
        m_new = jnp.maximum(m_prev, jnp.max(s, axis=-1, keepdims=True))
        alpha = jnp.exp(m_prev - m_new)
        p = jnp.exp(s - m_new)
        l_scr[...] = alpha * l_scr[...] + jnp.sum(p, axis=-1, keepdims=True)
        acc_scr[...] = alpha * acc_scr[...] + jnp.dot(
            p.astype(v_ref.dtype), v_ref[0], preferred_element_type=jnp.float32)
        m_scr[...] = m_new

    if causal:
        # Skip KV tiles that lie entirely above the causal diagonal for every
        # row handled by this M-tile (tile 0 is never skipped).
        run = (kv_idx * tkv) <= qmax_ref[pl.program_id(1)]
        pl.when(run)(_compute)
    else:
        _compute()

    @pl.when(kv_idx == pl.num_programs(2) - 1)
    def _finalize():
        inv_l = pl.reciprocal(l_scr[...], approx=True)
        o_ref[0] = (acc_scr[...] * inv_l).astype(o_ref.dtype)


def attention(q, k, v, attention_mask, *, causal: bool = False):
    """Pallas equivalent of Attention.forward (use_flash_attn=False)."""
    B, H, Sq, D = q.shape
    _, Skv, _ = k.shape
    assert k.shape == (B, Skv, D) and v.shape == (B, Skv, D)
    assert attention_mask.shape == (B, Skv)

    M = H * Sq                       # heads folded into the matmul M dimension
    TM = _pick_tile(M)
    TKV = _pick_tile(Skv)            # multiple of 128 or the full Skv
    num_m = M // TM
    num_kv = Skv // TKV

    q2 = q.reshape(B, M, D)          # (h, i) are adjacent -> pure reshape

    neg = -jnp.finfo(jnp.float32).max
    bias = jnp.where(attention_mask, 0.0, neg).astype(jnp.float32).reshape(B, 1, Skv)

    # per-folded-row query position (row h*Sq + i  ->  position i)
    qpos = jnp.tile(jnp.arange(Sq, dtype=jnp.int32), H).reshape(1, M, 1)
    qmax = jnp.max(qpos.reshape(num_m, TM), axis=1).astype(jnp.int32)  # (num_m,)

    kernel = functools.partial(
        _mqa_attention_kernel,
        causal=causal, tm=TM, tkv=TKV, scale=float(D) ** (-0.5))

    grid_spec = pltpu.PrefetchScalarGridSpec(
        num_scalar_prefetch=1,                 # qmax -> SMEM
        grid=(B, num_m, num_kv),
        in_specs=[
            pl.BlockSpec((1, TM, 1), lambda b, mi, ki, qmax: (0, mi, 0)),   # qpos
            pl.BlockSpec((1, TM, D), lambda b, mi, ki, qmax: (b, mi, 0)),   # q
            pl.BlockSpec((1, TKV, D), lambda b, mi, ki, qmax: (b, ki, 0)),  # k
            pl.BlockSpec((1, TKV, D), lambda b, mi, ki, qmax: (b, ki, 0)),  # v
            pl.BlockSpec((1, 1, TKV), lambda b, mi, ki, qmax: (b, 0, ki)),  # bias
        ],
        out_specs=pl.BlockSpec((1, TM, D), lambda b, mi, ki, qmax: (b, mi, 0)),
        scratch_shapes=[
            pltpu.VMEM((TM, 1), jnp.float32),   # running max
            pltpu.VMEM((TM, 1), jnp.float32),   # running denom
            pltpu.VMEM((TM, D), jnp.float32),   # running output accumulator
        ],
    )

    itemsize = q.dtype.itemsize
    cost = pl.CostEstimate(
        flops=4 * B * H * Sq * Skv * D,
        transcendentals=B * H * Sq * Skv,
        bytes_accessed=(q.size + k.size + v.size + B * M * D) * itemsize
                       + bias.size * 4 + qpos.size * 4)

    out = pl.pallas_call(
        kernel,
        out_shape=jax.ShapeDtypeStruct((B, M, D), q.dtype),
        grid_spec=grid_spec,
        compiler_params=pltpu.CompilerParams(
            dimension_semantics=("parallel", "parallel", "arbitrary")),
        cost_estimate=cost,
    )(qmax, qpos, q2, k, v, bias)

    return out.reshape(B, H, Sq, D)


def _reference(q, k, v, mask, *, causal=False):
    # plain-JAX reference mirroring the PyTorch forward
    scale = q.shape[-1] ** (-0.5)
    s = jnp.einsum("bhid,bjd->bhij", q, k) * scale
    neg = -jnp.finfo(s.dtype).max
    s = jnp.where(mask[:, None, None, :], s, neg)
    if causal:
        n, m = s.shape[-2], s.shape[-1]
        cm = jnp.triu(jnp.ones((n, m), dtype=bool), 1)
        s = jnp.where(cm[None, None], neg, s)
    attn = jax.nn.softmax(s, axis=-1)
    return jnp.einsum("bhij,bjd->bhid", attn, v)


if __name__ == "__main__":
    key = jax.random.PRNGKey(0)
    kq, kk, kv = jax.random.split(key, 3)

    B, H, Sq, Skv, D = 2, 4, 8, 8, 32
    q = jax.random.normal(kq, (B, H, Sq, D), dtype=jnp.float32)
    k = jax.random.normal(kk, (B, Skv, D), dtype=jnp.float32)
    v = jax.random.normal(kv, (B, Skv, D), dtype=jnp.float32)

    # key-padding mask: batch 0 attends to all keys, batch 1 has last 2 keys masked
    mask = jnp.ones((B, Skv), dtype=bool)
    mask = mask.at[1, -2:].set(False)

    out = jax.block_until_ready(attention(q, k, v, mask, causal=False))
    ref = _reference(q, k, v, mask, causal=False)
    assert out.shape == (B, H, Sq, D)
    assert jnp.allclose(out, ref, atol=2e-3, rtol=2e-3), "mismatch vs reference"

    # also exercise the causal branch of the module
    out_c = jax.block_until_ready(attention(q, k, v, mask, causal=True))
    ref_c = _reference(q, k, v, mask, causal=True)
    assert jnp.allclose(out_c, ref_c, atol=2e-3, rtol=2e-3), "causal mismatch"

    print("KERNEL_OK")
</pallas_src>

<mosaic_0001>
module attributes {stable_mosaic.version = 11 : i64} {
  func.func @_mqa_attention_kernel(%arg0: i32, %arg1: i32, %arg2: i32, %arg3: memref<1xi32, #tpu.memory_space<smem>>, %arg4: memref<1x32x1xi32, #tpu.memory_space<vmem>>, %arg5: memref<1x32x32xf32, #tpu.memory_space<vmem>>, %arg6: memref<1x8x32xf32, #tpu.memory_space<vmem>>, %arg7: memref<1x8x32xf32, #tpu.memory_space<vmem>>, %arg8: memref<1x1x8xf32, #tpu.memory_space<vmem>>, %arg9: memref<1x32x32xf32, #tpu.memory_space<vmem>>, %arg10: memref<32x1xf32, #tpu.memory_space<vmem>>, %arg11: memref<32x1xf32, #tpu.memory_space<vmem>>, %arg12: memref<32x32xf32, #tpu.memory_space<vmem>>) attributes {dimension_semantics = [#tpu.dimension_semantics<parallel>, #tpu.dimension_semantics<parallel>, #tpu.dimension_semantics<arbitrary>], iteration_bounds = array<i64: 2, 1, 1>, scalar_prefetch = 1 : i64, scratch_operands = 3 : i64, tpu.core_type = #tpu.core_type<tc>, window_params = [{transform_indices = @transform_0, window_bounds = array<i64: 1, 32, 1>}, {transform_indices = @transform_1, window_bounds = array<i64: 1, 32, 32>}, {transform_indices = @transform_2, window_bounds = array<i64: 1, 8, 32>}, {transform_indices = @transform_3, window_bounds = array<i64: 1, 8, 32>}, {transform_indices = @transform_4, window_bounds = array<i64: 1, 1, 8>}, {transform_indices = @transform_5, window_bounds = array<i64: 1, 32, 32>}]} {
    %c0_i32 = arith.constant 0 : i32
    %0 = arith.cmpi eq, %arg2, %c0_i32 : i32
    %1 = arith.extui %0 : i1 to i32
    %c0_i32_0 = arith.constant 0 : i32
    %2 = arith.cmpi ne, %1, %c0_i32_0 : i32
    scf.if %2 {
      %cst_30 = arith.constant 0xFF800000 : f32
      %41 = vector.broadcast %cst_30 : f32 to vector<32x1xf32>
      %c0_31 = arith.constant 0 : index
      %c0_32 = arith.constant 0 : index
      %42 = vector.load %arg10[%c0_31, %c0_32] : memref<32x1xf32, #tpu.memory_space<vmem>>, vector<32x1xf32>
      tpu.vector_store %arg10[%c0_31, %c0_32], %41 {strides = array<i32>} : memref<32x1xf32, #tpu.memory_space<vmem>>, vector<32x1xf32>,
      %cst_33 = arith.constant 0.000000e+00 : f32
      %43 = vector.broadcast %cst_33 : f32 to vector<32x1xf32>
      %c0_34 = arith.constant 0 : index
      %c0_35 = arith.constant 0 : index
      %44 = vector.load %arg11[%c0_34, %c0_35] : memref<32x1xf32, #tpu.memory_space<vmem>>, vector<32x1xf32>
      tpu.vector_store %arg11[%c0_34, %c0_35], %43 {strides = array<i32>} : memref<32x1xf32, #tpu.memory_space<vmem>>, vector<32x1xf32>,
      %cst_36 = arith.constant 0.000000e+00 : f32
      %45 = vector.broadcast %cst_36 : f32 to vector<32x32xf32>
      %c0_37 = arith.constant 0 : index
      %c0_38 = arith.constant 0 : index
      %46 = vector.load %arg12[%c0_37, %c0_38] : memref<32x32xf32, #tpu.memory_space<vmem>>, vector<32x32xf32>
      tpu.vector_store %arg12[%c0_37, %c0_38], %45 {strides = array<i32>} : memref<32x32xf32, #tpu.memory_space<vmem>>, vector<32x32xf32>,
    } else {
    }
    %c0 = arith.constant 0 : index
    %c0_1 = arith.constant 0 : index
    %c0_2 = arith.constant 0 : index
    %3 = vector.load %arg5[%c0, %c0_1, %c0_2] : memref<1x32x32xf32, #tpu.memory_space<vmem>>, vector<1x32x32xf32>
    %4 = vector.shape_cast %3 : vector<1x32x32xf32> to vector<32x32xf32>
    %c0_3 = arith.constant 0 : index
    %c0_4 = arith.constant 0 : index
    %c0_5 = arith.constant 0 : index
    %5 = vector.load %arg6[%c0_3, %c0_4, %c0_5] : memref<1x8x32xf32, #tpu.memory_space<vmem>>, vector<1x8x32xf32>
    %6 = vector.shape_cast %5 : vector<1x8x32xf32> to vector<8x32xf32>
    %c0_6 = arith.constant 0 : index
    %c0_7 = arith.constant 0 : index
    %c0_8 = arith.constant 0 : index
    %7 = vector.load %arg8[%c0_6, %c0_7, %c0_8] : memref<1x1x8xf32, #tpu.memory_space<vmem>>, vector<1x1x8xf32>
    %8 = vector.shape_cast %7 : vector<1x1x8xf32> to vector<1x8xf32>
    %cst = arith.constant dense<0.000000e+00> : vector<32x8xf32>
    %9 = tpu.matmul %4, %6, %cst {dimension_numbers = #tpu.dot_dimension_numbers<[1], [1], [0], [0], [0, 0, 1, 0], [], []>} : vector<32x32xf32>, vector<8x32xf32>, vector<32x8xf32> -> vector<32x8xf32>
    %cst_9 = arith.constant 0.176776692 : f32
    %10 = vector.broadcast %cst_9 : f32 to vector<32x8xf32>
    %11 = arith.mulf %9, %10 : vector<32x8xf32>
    %12 = vector.broadcast %8 : vector<1x8xf32> to vector<32x8xf32>
    %13 = arith.addf %11, %12 : vector<32x8xf32>
    %c0_10 = arith.constant 0 : index
    %c0_11 = arith.constant 0 : index
    %14 = vector.load %arg10[%c0_10, %c0_11] : memref<32x1xf32, #tpu.memory_space<vmem>>, vector<32x1xf32>
    %cst_12 = arith.constant dense<0xFF800000> : vector<32xf32>
    %15 = vector.multi_reduction <maximumf>, %13, %cst_12 [1] : vector<32x8xf32> to vector<32xf32>
    %16 = vector.shape_cast %15 : vector<32xf32> to vector<32x1xf32>
    %17 = arith.maximumf %14, %16 : vector<32x1xf32>
    %18 = arith.subf %14, %17 : vector<32x1xf32>
    %19 = math.exp %18 : vector<32x1xf32>
    %20 = vector.broadcast %17 : vector<32x1xf32> to vector<32x8xf32>
    %21 = arith.subf %13, %20 : vector<32x8xf32>
    %22 = math.exp %21 : vector<32x8xf32>
    %c0_13 = arith.constant 0 : index
    %c0_14 = arith.constant 0 : index
    %23 = vector.load %arg11[%c0_13, %c0_14] : memref<32x1xf32, #tpu.memory_space<vmem>>, vector<32x1xf32>
    %24 = arith.mulf %19, %23 : vector<32x1xf32>
    %cst_15 = arith.constant dense<0.000000e+00> : vector<32xf32>
    %25 = vector.multi_reduction <add>, %22, %cst_15 [1] : vector<32x8xf32> to vector<32xf32>
    %26 = vector.shape_cast %25 : vector<32xf32> to vector<32x1xf32>
    %27 = arith.addf %24, %26 : vector<32x1xf32>
    %c0_16 = arith.constant 0 : index
    %c0_17 = arith.constant 0 : index
    %28 = vector.load %arg11[%c0_16, %c0_17] : memref<32x1xf32, #tpu.memory_space<vmem>>, vector<32x1xf32>
    tpu.vector_store %arg11[%c0_16, %c0_17], %27 {strides = array<i32>} : memref<32x1xf32, #tpu.memory_space<vmem>>, vector<32x1xf32>,
    %c0_18 = arith.constant 0 : index
    %c0_19 = arith.constant 0 : index
    %29 = vector.load %arg12[%c0_18, %c0_19] : memref<32x32xf32, #tpu.memory_space<vmem>>, vector<32x32xf32>
    %30 = vector.broadcast %19 : vector<32x1xf32> to vector<32x32xf32>
    %31 = arith.mulf %30, %29 : vector<32x32xf32>
    %c0_20 = arith.constant 0 : index
    %c0_21 = arith.constant 0 : index
    %c0_22 = arith.constant 0 : index
    %32 = vector.load %arg7[%c0_20, %c0_21, %c0_22] : memref<1x8x32xf32, #tpu.memory_space<vmem>>, vector<1x8x32xf32>
    %33 = vector.shape_cast %32 : vector<1x8x32xf32> to vector<8x32xf32>
    %cst_23 = arith.constant dense<0.000000e+00> : vector<32x32xf32>
    %34 = tpu.matmul %22, %33, %cst_23 {dimension_numbers = #tpu.dot_dimension_numbers<[1], [0], [0], [1], [0, 0, 1, 1], [], []>} : vector<32x8xf32>, vector<8x32xf32>, vector<32x32xf32> -> vector<32x32xf32>
    %35 = arith.addf %31, %34 : vector<32x32xf32>
    %c0_24 = arith.constant 0 : index
    %c0_25 = arith.constant 0 : index
    %36 = vector.load %arg12[%c0_24, %c0_25] : memref<32x32xf32, #tpu.memory_space<vmem>>, vector<32x32xf32>
    tpu.vector_store %arg12[%c0_24, %c0_25], %35 {strides = array<i32>} : memref<32x32xf32, #tpu.memory_space<vmem>>, vector<32x32xf32>,
    %c0_26 = arith.constant 0 : index
    %c0_27 = arith.constant 0 : index
    %37 = vector.load %arg10[%c0_26, %c0_27] : memref<32x1xf32, #tpu.memory_space<vmem>>, vector<32x1xf32>
    tpu.vector_store %arg10[%c0_26, %c0_27], %17 {strides = array<i32>} : memref<32x1xf32, #tpu.memory_space<vmem>>, vector<32x1xf32>,
    %c0_i32_28 = arith.constant 0 : i32
    %38 = arith.cmpi eq, %arg2, %c0_i32_28 : i32
    %39 = arith.extui %38 : i1 to i32
    %c0_i32_29 = arith.constant 0 : i32
    %40 = arith.cmpi ne, %39, %c0_i32_29 : i32
    scf.if %40 {
      %c0_30 = arith.constant 0 : index
      %c0_31 = arith.constant 0 : index
      %41 = vector.load %arg11[%c0_30, %c0_31] : memref<32x1xf32, #tpu.memory_space<vmem>>, vector<32x1xf32>
      %42 = tpu.reciprocal %41 {approx = true} : vector<32x1xf32> -> vector<32x1xf32>
      %c0_32 = arith.constant 0 : index
      %c0_33 = arith.constant 0 : index
      %43 = vector.load %arg12[%c0_32, %c0_33] : memref<32x32xf32, #tpu.memory_space<vmem>>, vector<32x32xf32>
      %44 = vector.broadcast %42 : vector<32x1xf32> to vector<32x32xf32>
      %45 = arith.mulf %43, %44 : vector<32x32xf32>
      %c0_34 = arith.constant 0 : index
      %c0_35 = arith.constant 0 : index
      %c0_36 = arith.constant 0 : index
      %46 = vector.load %arg9[%c0_34, %c0_35, %c0_36] : memref<1x32x32xf32, #tpu.memory_space<vmem>>, vector<1x32x32xf32>
      %47 = vector.shape_cast %46 : vector<1x32x32xf32> to vector<32x32xf32>
      %48 = vector.shape_cast %45 : vector<32x32xf32> to vector<1x32x32xf32>
      tpu.vector_store %arg9[%c0_34, %c0_35, %c0_36], %48 {strides = array<i32>} : memref<1x32x32xf32, #tpu.memory_space<vmem>>, vector<1x32x32xf32>,
    } else {
    }
    return
  }
  func.func @transform_0(%arg0: i32, %arg1: i32, %arg2: i32, %arg3: memref<1xi32, #tpu.memory_space<smem>>) -> (i32, i32, i32) {
    %c0_i32 = arith.constant 0 : i32
    %c0_i32_0 = arith.constant 0 : i32
    %c0_i32_1 = arith.constant 0 : i32
    return %c0_i32, %arg1, %c0_i32_0 : i32, i32, i32
  }
  func.func @transform_1(%arg0: i32, %arg1: i32, %arg2: i32, %arg3: memref<1xi32, #tpu.memory_space<smem>>) -> (i32, i32, i32) {
    %c0_i32 = arith.constant 0 : i32
    %c0_i32_0 = arith.constant 0 : i32
    return %arg0, %arg1, %c0_i32 : i32, i32, i32
  }
  func.func @transform_2(%arg0: i32, %arg1: i32, %arg2: i32, %arg3: memref<1xi32, #tpu.memory_space<smem>>) -> (i32, i32, i32) {
    %c0_i32 = arith.constant 0 : i32
    %c0_i32_0 = arith.constant 0 : i32
    return %arg0, %arg2, %c0_i32 : i32, i32, i32
  }
  func.func @transform_3(%arg0: i32, %arg1: i32, %arg2: i32, %arg3: memref<1xi32, #tpu.memory_space<smem>>) -> (i32, i32, i32) {
    %c0_i32 = arith.constant 0 : i32
    %c0_i32_0 = arith.constant 0 : i32
    return %arg0, %arg2, %c0_i32 : i32, i32, i32
  }
  func.func @transform_4(%arg0: i32, %arg1: i32, %arg2: i32, %arg3: memref<1xi32, #tpu.memory_space<smem>>) -> (i32, i32, i32) {
    %c0_i32 = arith.constant 0 : i32
    %c0_i32_0 = arith.constant 0 : i32
    return %arg0, %c0_i32, %arg2 : i32, i32, i32
  }
  func.func @transform_5(%arg0: i32, %arg1: i32, %arg2: i32, %arg3: memref<1xi32, #tpu.memory_space<smem>>) -> (i32, i32, i32) {
    %c0_i32 = arith.constant 0 : i32
    %c0_i32_0 = arith.constant 0 : i32
    return %arg0, %arg1, %c0_i32 : i32, i32, i32
  }
}

</mosaic_0001>

<llo_original>
// kernel: tpu_custom_call.1
$region0: #{tpu_custom_call.1}
  #allocation0 [shape = 'u32[]', space=smem, size = 0x4, offset = 0x4, fixed_abs, tag = 'smem constant byte address 0x4 - core index']
  #allocation1 [shape = 'u32[144,128]{1,0:T(1,128)}', space=vmem, size = 0x12000, scoped, tag = 'internal scratch']
  #allocation2 [shape = 'f32[32,1]{1,0:T(8,128)}', space=vmem, size = 0x4000, scoped, tag = 'scratch operand']
  #allocation3 [shape = 'f32[32,1]{1,0:T(8,128)}', space=vmem, size = 0x4000, scoped, tag = 'scratch operand']
  #allocation4 [shape = 'f32[32,32]{1,0:T(8,128)}', space=vmem, size = 0x4000, scoped, tag = 'scratch operand']
  #allocation5 [shape = 's32[1]{0}', space=sflag, size = 0x4, scoped, tag = 'scoped memory for tpu_custom_call.1']
  #allocation6 [shape = 's32[1]{0:T(128)S(6)}', space=smem, size = 0x200, scoped, tag = 'prefetched SMEM operand 0']
  %s0 = inlined_call_operand.<no memory space> [shape: s32[1], index: 0, kind: input, shape index: {}]
  %s1 = inlined_call_operand.vmem [shape: s32[1,32,1], index: 1, kind: input, shape index: {}]
  %s2 = inlined_call_operand.hbm [shape: f32[2,32,32], index: 2, kind: input, shape index: {}]
  %s3 = inlined_call_operand.vmem [shape: f32[2,8,32], index: 3, kind: input, shape index: {}]
  %s4 = inlined_call_operand.vmem [shape: f32[2,8,32], index: 4, kind: input, shape index: {}]
  %s5 = inlined_call_operand.vmem [shape: f32[2,1,8], index: 5, kind: input, shape index: {}]
  %s6 = inlined_call_operand.hbm [shape: f32[2,32,32], index: 6, kind: output, shape index: {}]
  %s7 = sld [smem:[#allocation0]]
  $region65: #{tpu_custom_call.1} parent=0
    _
  %s9 = ssub.s32 1, %s7
  %s10 = scalar_select 0, %s9, %s7
  %11 = sst [smem:[#allocation6]] %s0
  $region1: #{tpu_custom_call.1} parent=0
    #allocation7 [shape = 'u8[32768]{0}', space=vmem, size = 0x8000, scoped, tag = 'input window, operand 2']
    #allocation8 [shape = 's32[2]{0}', space=sflag, size = 0x8, scoped, tag = 'scoped memory for tpu_custom_call.1']
    #allocation9 [shape = 's32[2]{0}', space=sflag, size = 0x8, scoped, tag = 'scoped memory for tpu_custom_call.1']
    #allocation10 [shape = 'u8[32768]{0}', space=vmem, size = 0x8000, scoped, tag = 'output window, operand 0']
    %12 = vsyncpa [#allocation8], 0
    %s13 = scalar_lea.sflag [#allocation8], 1
    %14 = vsyncpa %s13, 0
    %15 = vsyncpa [#allocation9], 0
    %s16 = scalar_lea.sflag [#allocation9], 1
    %17 = vsyncpa %s16, 0
    loop: start=0, step=1, limit=4
    $region2: #{tpu_custom_call.1} parent=1 // loop_pre_header
      _
    $region3: #{tpu_custom_call.1} parent=1 // loop_header
      %s19 = sphi 0, %s23
      %p20 = scmp.ge.s32.totalorder %s19, 4
      %s26 = sphi 0, %s45
      %s27 = sphi 0, %s41
      %s28 = sphi 0, %s37
      %s29 = sphi 0, %s26
      %s30 = sphi 0, %s27
      %s31 = sphi 0, %s28
      %s32 = sphi 0, %s29
      %s33 = sphi 0, %s30
      %s34 = sphi 0, %s31
      %s48 = sphi 0, %s50
      %s51 = sphi 0, %s48
      %s52 = sphi 0, %s51
      %s68 = sphi 0, %s52
      %s76 = sphi 0, %s78
      %s79 = sphi 0, %s76
      %s80 = sphi 0, %s79
      %s96 = sphi 0, %s80
      %s104 = sphi 0, %s106
      %s107 = sphi 0, %s104
      %s108 = sphi 0, %s107
      %s124 = sphi 0, %s108
      %s132 = sphi 0, %s134
      %s135 = sphi 0, %s132
      %s136 = sphi 0, %s135
      %s152 = sphi 0, %s136
      %s160 = sphi 0, %s162
      %s163 = sphi 0, %s160
      %s164 = sphi 0, %s163
      %s180 = sphi 0, %s164
      %s188 = sphi 0, %s190
      %s191 = sphi 0, %s188
      %s192 = sphi 0, %s191
      %s208 = sphi 0, %s192
    $region4: #{tpu_custom_call.1} parent=1 // loop_header_branch
      %22 = sbr.rel (%p20) target = $region8
    $region5: #{tpu_custom_call.1} parent=1 // loop_body
      %s24 = ssub.s32 %s19, 1
      %s25 = ssub.s32 %s19, 2
      %s35 = sadd.s32 1, %s28
      %p36 = scmp.ge.s32.totalorder %s35, 1
      %s37 = scalar_select %p36, 0, %s35
      %s38 = sadd.s32 1, %s27
      %s39 = scalar_select %p36, %s38, %s27
      %p40 = scmp.ge.s32.totalorder %s39, 1
      %s41 = scalar_select %p40, 0, %s39
      %s42 = sadd.s32 1, %s26
      %s43 = scalar_select %p40, %s42, %s26
      %p44 = scmp.ge.s32.totalorder %s43, 2
      %s45 = scalar_select %p44, 0, %s43
      %s46 = ssub.s32 %s27, %s41
      %p47 = scmp.eq.s32.totalorder %s46, 0
      %s49 = sadd.s32 %s48, 1
      %s50 = scalar_select %p47, %s48, %s49
      %p53 = pneg %p47
      %p54 = scmp.eq.s32.totalorder %s19, 1
      %p55 = por %p53, %p54
      %p56 = scmp.ne.s32.totalorder %s48, %s51
      %p57 = scmp.eq.s32.totalorder %s19, 0
      %p58 = por %p56, %p57
      %p59 = scmp.ne.s32.totalorder %s48, %s51
      %p60 = scmp.eq.s32.totalorder %s24, 1
      %p61 = por %p59, %p60
      %p62 = scmp.ne.s32.totalorder %s51, %s52
      %p63 = scmp.eq.s32.totalorder %s24, 0
      %p64 = por %p62, %p63
      %p65 = scmp.ne.s32.totalorder %s51, %s52
      %p66 = scmp.eq.s32.totalorder %s25, 1
      %p67 = por %p65, %p66
      %p69 = scmp.ne.s32.totalorder %s52, %s68
      %p70 = scmp.eq.s32.totalorder %s25, 0
      %p71 = por %p69, %p70
      %s72 = ssub.s32 %s26, %s45
      %s73 = ssub.s32 %s27, %s41
      %s74 = sor.u32 %s72, %s73
      %p75 = scmp.eq.s32.totalorder %s74, 0
      %s77 = sadd.s32 %s76, 1
      %s78 = scalar_select %p75, %s76, %s77
      %p81 = pneg %p75
      %p82 = scmp.eq.s32.totalorder %s19, 1
      %p83 = por %p81, %p82
      %p84 = scmp.ne.s32.totalorder %s76, %s79
      %p85 = scmp.eq.s32.totalorder %s19, 0
      %p86 = por %p84, %p85
      %p87 = scmp.ne.s32.totalorder %s76, %s79
      %p88 = scmp.eq.s32.totalorder %s24, 1
      %p89 = por %p87, %p88
      %p90 = scmp.ne.s32.totalorder %s79, %s80
      %p91 = scmp.eq.s32.totalorder %s24, 0
      %p92 = por %p90, %p91
      %p93 = scmp.ne.s32.totalorder %s79, %s80
      %p94 = scmp.eq.s32.totalorder %s25, 1
      %p95 = por %p93, %p94
      %p97 = scmp.ne.s32.totalorder %s80, %s96
      %p98 = scmp.eq.s32.totalorder %s25, 0
      %p99 = por %p97, %p98
      %s100 = ssub.s32 %s26, %s45
      %s101 = ssub.s32 %s28, %s37
      %s102 = sor.u32 %s100, %s101
      %p103 = scmp.eq.s32.totalorder %s102, 0
      %s105 = sadd.s32 %s104, 1
      %s106 = scalar_select %p103, %s104, %s105
      %p109 = pneg %p103
      %p110 = scmp.eq.s32.totalorder %s19, 1
      %p111 = por %p109, %p110
      %p112 = scmp.ne.s32.totalorder %s104, %s107
      %p113 = scmp.eq.s32.totalorder %s19, 0
      %p114 = por %p112, %p113
      %p115 = scmp.ne.s32.totalorder %s104, %s107
      %p116 = scmp.eq.s32.totalorder %s24, 1
      %p117 = por %p115, %p116
      %p118 = scmp.ne.s32.totalorder %s107, %s108
      %p119 = scmp.eq.s32.totalorder %s24, 0
      %p120 = por %p118, %p119
      %p121 = scmp.ne.s32.totalorder %s107, %s108
      %p122 = scmp.eq.s32.totalorder %s25, 1
      %p123 = por %p121, %p122
      %p125 = scmp.ne.s32.totalorder %s108, %s124
      %p126 = scmp.eq.s32.totalorder %s25, 0
      %p127 = por %p125, %p126
      %s128 = ssub.s32 %s26, %s45
      %s129 = ssub.s32 %s28, %s37
      %s130 = sor.u32 %s128, %s129
      %p131 = scmp.eq.s32.totalorder %s130, 0
      %s133 = sadd.s32 %s132, 1
      %s134 = scalar_select %p131, %s132, %s133
      %p137 = pneg %p131
      %p138 = scmp.eq.s32.totalorder %s19, 1
      %p139 = por %p137, %p138
      %p140 = scmp.ne.s32.totalorder %s132, %s135
      %p141 = scmp.eq.s32.totalorder %s19, 0
      %p142 = por %p140, %p141
      %p143 = scmp.ne.s32.totalorder %s132, %s135
      %p144 = scmp.eq.s32.totalorder %s24, 1
      %p145 = por %p143, %p144
      %p146 = scmp.ne.s32.totalorder %s135, %s136
      %p147 = scmp.eq.s32.totalorder %s24, 0
      %p148 = por %p146, %p147
      %p149 = scmp.ne.s32.totalorder %s135, %s136
      %p150 = scmp.eq.s32.totalorder %s25, 1
      %p151 = por %p149, %p150
      %p153 = scmp.ne.s32.totalorder %s136, %s152
      %p154 = scmp.eq.s32.totalorder %s25, 0
      %p155 = por %p153, %p154
      %s156 = ssub.s32 %s26, %s45
      %s157 = ssub.s32 %s28, %s37
      %s158 = sor.u32 %s156, %s157
      %p159 = scmp.eq.s32.totalorder %s158, 0
      %s161 = sadd.s32 %s160, 1
      %s162 = scalar_select %p159, %s160, %s161
      %p165 = pneg %p159
      %p166 = scmp.eq.s32.totalorder %s19, 1
      %p167 = por %p165, %p166
      %p168 = scmp.ne.s32.totalorder %s160, %s163
      %p169 = scmp.eq.s32.totalorder %s19, 0
      %p170 = por %p168, %p169
      %p171 = scmp.ne.s32.totalorder %s160, %s163
      %p172 = scmp.eq.s32.totalorder %s24, 1
      %p173 = por %p171, %p172
      %p174 = scmp.ne.s32.totalorder %s163, %s164
      %p175 = scmp.eq.s32.totalorder %s24, 0
      %p176 = por %p174, %p175
      %p177 = scmp.ne.s32.totalorder %s163, %s164
      %p178 = scmp.eq.s32.totalorder %s25, 1
      %p179 = por %p177, %p178
      %p181 = scmp.ne.s32.totalorder %s164, %s180
      %p182 = scmp.eq.s32.totalorder %s25, 0
      %p183 = por %p181, %p182
      %s184 = ssub.s32 %s26, %s45
      %s185 = ssub.s32 %s27, %s41
      %s186 = sor.u32 %s184, %s185
      %p187 = scmp.eq.s32.totalorder %s186, 0
      %s189 = sadd.s32 %s188, 1
      %s190 = scalar_select %p187, %s188, %s189
      %p193 = pneg %p187
      %p194 = scmp.eq.s32.totalorder %s19, 1
      %p195 = por %p193, %p194
      %p196 = scmp.ne.s32.totalorder %s188, %s191
      %p197 = scmp.eq.s32.totalorder %s19, 0
      %p198 = por %p196, %p197
      %p199 = scmp.ne.s32.totalorder %s188, %s191
      %p200 = scmp.eq.s32.totalorder %s24, 1
      %p201 = por %p199, %p200
      %p202 = scmp.ne.s32.totalorder %s191, %s192
      %p203 = scmp.eq.s32.totalorder %s24, 0
      %p204 = por %p202, %p203
      %p205 = scmp.ne.s32.totalorder %s191, %s192
      %p206 = scmp.eq.s32.totalorder %s25, 1
      %p207 = por %p205, %p206
      %p209 = scmp.ne.s32.totalorder %s192, %s208
      %p210 = scmp.eq.s32.totalorder %s25, 0
      %p211 = por %p209, %p210
      %p212 = scmp.le.s32.totalorder 1, %s19
      %p213 = scmp.lt.s32.totalorder %s19, 3
      %p214 = pnand %p212, %p213
      %p215 = pneg %p214
      // Predicated region
      $region9: #{tpu_custom_call.1} parent=5 // pred_check
        _
      $region10: #{tpu_custom_call.1} parent=5 // pred_check_branch
        %217 = sbr.rel (%p214) target = $region12
      $region11: #{tpu_custom_call.1} parent=5 // pred_region
        %s218 = ssub.s32 %s19, 1
        // Predicated region
        $region13: #{tpu_custom_call.1} parent=11 // pred_check
          %p219 = pneg %p64
        $region14: #{tpu_custom_call.1} parent=11 // pred_check_branch
          %221 = sbr.rel (%p219) target = $region16
        $region15: #{tpu_custom_call.1} parent=11 // pred_region
          %s222 = smul.u32 4, %s30
          %p223 = scmp.lt.s32.totalorder %s222, 3
          %s224 = scalar_select %p223, %s222, 3
          %s225 = smul.addr %s224, 8
          %s226 = scalar_lea.vmem %s1, %s225
          %s227 = smul.u32 4, %s30
        $region16: #{tpu_custom_call.1} parent=11 // pred_fallthru
          _
      $region12: #{tpu_custom_call.1} parent=5 // pred_fallthru
        _
      %p228 = scmp.lt.s32.totalorder %s19, 2
      // Predicated region
      $region17: #{tpu_custom_call.1} parent=5 // pred_check
        %p229 = pneg %p228
      $region18: #{tpu_custom_call.1} parent=5 // pred_check_branch
        %231 = sbr.rel (%p229) target = $region20
      $region19: #{tpu_custom_call.1} parent=5 // pred_region
        // Predicated region
        $region21: #{tpu_custom_call.1} parent=19 // pred_check
          %p232 = pneg %p86
        $region22: #{tpu_custom_call.1} parent=19 // pred_check_branch
          %234 = sbr.rel (%p232) target = $region24
        $region23: #{tpu_custom_call.1} parent=19 // pred_region
          %s235 = sand.u32 %s76, 1
          %s236 = scalar_lea.sflag [#allocation8], %s235
          %s237 = sand.u32 %s76, 1
          %s238 = smul.addr %s237, 32
          %s239 = scalar_lea.vmem [#allocation7], %s238
          %s240 = smul.u32 4, %s27
          %s242 = ssub.s32 512, 512
          %243 = vsyncadd %s236, %s242
          %s244 = smul.addr %s26, 4
          %s245 = sadd.s32 %s240, %s244
          %s246 = smul.addr %s245, 128
          %s247 = scalar_lea.hbm %s2, %s246
          %s248 = sshll.u32 %s239, 4
          %s249 = int_to_ptr.vmem [resolvable:$true] %s248
          %254 = dma.hbm_to_vmem [thread:$0]  %s247, 512, %s249, %s236, 128, 128, 8
        $region24: #{tpu_custom_call.1} parent=19 // pred_fallthru
          _
        // Predicated region
        $region25: #{tpu_custom_call.1} parent=19 // pred_check
          %p255 = pneg %p114
        $region26: #{tpu_custom_call.1} parent=19 // pred_check_branch
          %257 = sbr.rel (%p255) target = $region28
        $region27: #{tpu_custom_call.1} parent=19 // pred_region
          %p258 = scmp.lt.s32.totalorder %s26, 1
          %s259 = scalar_select %p258, %s26, 1
          %p260 = scmp.lt.s32.totalorder %s28, 0
          %s261 = scalar_select %p260, %s28, 0
          %s262 = sadd.s32 %s261, %s259
          %s263 = smul.addr %s262, 8
          %s264 = scalar_lea.vmem %s3, %s263
        $region28: #{tpu_custom_call.1} parent=19 // pred_fallthru
          _
        // Predicated region
        $region29: #{tpu_custom_call.1} parent=19 // pred_check
          %p265 = pneg %p142
        $region30: #{tpu_custom_call.1} parent=19 // pred_check_branch
          %267 = sbr.rel (%p265) target = $region32
        $region31: #{tpu_custom_call.1} parent=19 // pred_region
          %p268 = scmp.lt.s32.totalorder %s26, 1
          %s269 = scalar_select %p268, %s26, 1
          %p270 = scmp.lt.s32.totalorder %s28, 0
          %s271 = scalar_select %p270, %s28, 0
          %s272 = sadd.s32 %s271, %s269
          %s273 = smul.addr %s272, 8
          %s274 = scalar_lea.vmem %s4, %s273
        $region32: #{tpu_custom_call.1} parent=19 // pred_fallthru
          _
        // Predicated region
        $region33: #{tpu_custom_call.1} parent=19 // pred_check
          %p275 = pneg %p170
        $region34: #{tpu_custom_call.1} parent=19 // pred_check_branch
          %277 = sbr.rel (%p275) target = $region36
        $region35: #{tpu_custom_call.1} parent=19 // pred_region
          %p278 = scmp.lt.s32.totalorder %s26, 1
          %s279 = scalar_select %p278, %s26, 1
          %p280 = scmp.lt.s32.totalorder %s28, 0
          %s281 = scalar_select %p280, %s28, 0
          %s282 = sadd.s32 %s281, %s279
          %s283 = scalar_lea.vmem %s5, %s282
        $region36: #{tpu_custom_call.1} parent=19 // pred_fallthru
          _
      $region20: #{tpu_custom_call.1} parent=5 // pred_fallthru
        _
      %p284 = scmp.le.s32.totalorder 1, %s19
      %p285 = scmp.lt.s32.totalorder %s19, 3
      %p286 = pnand %p284, %p285
      %p287 = pneg %p286
      // Predicated region
      $region37: #{tpu_custom_call.1} parent=5 // pred_check
        _
      $region38: #{tpu_custom_call.1} parent=5 // pred_check_branch
        %289 = sbr.rel (%p286) target = $region40
      $region39: #{tpu_custom_call.1} parent=5 // pred_region
        %s290 = ssub.s32 %s19, 1
        %s291 = sand.u32 %s79, 1
        %s292 = scalar_lea.sflag [#allocation8], %s291
        %s293 = sand.u32 %s79, 1
        %s294 = smul.addr %s293, 32
        %s295 = scalar_lea.vmem [#allocation7], %s294
        // Predicated region
        $region41: #{tpu_custom_call.1} parent=39 // pred_check
          %p296 = pneg %p92
        $region42: #{tpu_custom_call.1} parent=39 // pred_check_branch
          %298 = sbr.rel (%p296) target = $region44
        $region43: #{tpu_custom_call.1} parent=39 // pred_region
          %299 = dma.done %s292, 512
        $region44: #{tpu_custom_call.1} parent=39 // pred_fallthru
          _
        %s300 = smul.u32 4, %s30
        %p301 = scmp.lt.s32.totalorder %s300, 3
        %s302 = scalar_select %p301, %s300, 3
        %s303 = smul.addr %s302, 8
        %s304 = scalar_lea.vmem %s1, %s303
        %p305 = pneg %p64
        %p306 = pneg %p61
        %s307 = sand.u32 %s79, 1
        %s308 = scalar_lea.sflag [#allocation8], %s307
        %s309 = sand.u32 %s79, 1
        %s310 = smul.addr %s309, 32
        %s311 = scalar_lea.vmem [#allocation7], %s310
        %p312 = pneg %p92
        %p313 = pneg %p89
        %p314 = scmp.lt.s32.totalorder %s29, 1
        %s315 = scalar_select %p314, %s29, 1
        %p316 = scmp.lt.s32.totalorder %s31, 0
        %s317 = scalar_select %p316, %s31, 0
        %s318 = sadd.s32 %s317, %s315
        %s319 = smul.addr %s318, 8
        %s320 = scalar_lea.vmem %s3, %s319
        %p321 = pneg %p120
        %p322 = pneg %p117
        %p323 = scmp.lt.s32.totalorder %s29, 1
        %s324 = scalar_select %p323, %s29, 1
        %p325 = scmp.lt.s32.totalorder %s31, 0
        %s326 = scalar_select %p325, %s31, 0
        %s327 = sadd.s32 %s326, %s324
        %s328 = smul.addr %s327, 8
        %s329 = scalar_lea.vmem %s4, %s328
        %p330 = pneg %p148
        %p331 = pneg %p145
        %p332 = scmp.lt.s32.totalorder %s29, 1
        %s333 = scalar_select %p332, %s29, 1
        %p334 = scmp.lt.s32.totalorder %s31, 0
        %s335 = scalar_select %p334, %s31, 0
        %s336 = sadd.s32 %s335, %s333
        %s337 = scalar_lea.vmem %s5, %s336
        %p338 = pneg %p176
        %p339 = pneg %p173
        %p340 = pneg %p204
        %p341 = pneg %p201
        %s342 = sand.u32 %s191, 1
        %s343 = scalar_lea.sflag [#allocation9], %s342
        %s344 = sand.u32 %s191, 1
        %s345 = smul.addr %s344, 32
        %s346 = scalar_lea.vmem [#allocation10], %s345
        %s347 = smul.u32 4, %s30
        %p348 = scmp.lt.s32.totalorder %s347, 3
        %s349 = scalar_select %p348, %s347, 3
        %s350 = smul.addr %s349, 8
        %s351 = scalar_lea.vmem %s1, %s350
        %s352 = smul.u32 4, %s30
        %s353 = smul.u32 4, %s30
        %p354 = scmp.lt.s32.totalorder %s29, 1
        %s355 = scalar_select %p354, %s29, 1
        %p356 = scmp.lt.s32.totalorder %s31, 0
        %s357 = scalar_select %p356, %s31, 0
        %s358 = sadd.s32 %s357, %s355
        %s359 = smul.addr %s358, 8
        %s360 = scalar_lea.vmem %s3, %s359
        %p361 = scmp.lt.s32.totalorder %s29, 1
        %s362 = scalar_select %p361, %s29, 1
        %p363 = scmp.lt.s32.totalorder %s31, 0
        %s364 = scalar_select %p363, %s31, 0
        %s365 = sadd.s32 %s364, %s362
        %s366 = smul.addr %s365, 8
        %s367 = scalar_lea.vmem %s4, %s366
        %p368 = scmp.lt.s32.totalorder %s29, 1
        %s369 = scalar_select %p368, %s29, 1
        %p370 = scmp.lt.s32.totalorder %s31, 0
        %s371 = scalar_select %p370, %s31, 0
        %s372 = sadd.s32 %s371, %s369
        %s373 = scalar_lea.vmem %s5, %s372
        %s374 = smul.u32 4, %s30
        %p375 = scmp.eq.s32.totalorder %s31, 0
        // Predicated region
        $region45: #{tpu_custom_call.1} parent=39 // pred_check
          %p376 = pneg %p375
        $region46: #{tpu_custom_call.1} parent=39 // pred_check_branch
          %378 = sbr.rel (%p376) target = $region48
        $region47: #{tpu_custom_call.1} parent=39 // pred_region
          %vm379 = vcmask 7168
          %380 = vst.msk [vmem:[#allocation2] sm:$0xff] %vm379, -inf
          %381 = vst.msk [vmem:[#allocation2 + $0x8] sm:$0xff] %vm379, -inf
          %382 = vst.msk [vmem:[#allocation2 + $0x10] sm:$0xff] %vm379, -inf
          %383 = vst.msk [vmem:[#allocation2 + $0x18] sm:$0xff] %vm379, -inf
          %384 = vst.msk [vmem:[#allocation3] sm:$0xff] %vm379, 0.0
          %385 = vst.msk [vmem:[#allocation3 + $0x8] sm:$0xff] %vm379, 0.0
          %386 = vst.msk [vmem:[#allocation3 + $0x10] sm:$0xff] %vm379, 0.0
          %387 = vst.msk [vmem:[#allocation3 + $0x18] sm:$0xff] %vm379, 0.0
          %vm388 = vcmask 261120
          %389 = vst.msk [vmem:[#allocation4] sm:$0xff] %vm388, 0.0
          %390 = vst.msk [vmem:[#allocation4 + $0x8] sm:$0xff] %vm388, 0.0
          %391 = vst.msk [vmem:[#allocation4 + $0x10] sm:$0xff] %vm388, 0.0
          %392 = vst.msk [vmem:[#allocation4 + $0x18] sm:$0xff] %vm388, 0.0
        $region48: #{tpu_custom_call.1} parent=39 // pred_fallthru
          _
        %v393 = vld [vmem:[%s295] sm:$0xff]
        %v394 = vld [vmem:[%s295 + $0x8] sm:$0xff]
        %v395 = vld [vmem:[%s295 + $0x10] sm:$0xff]
        %v396 = vld [vmem:[%s295 + $0x18] sm:$0xff]
        %v397 = vld [vmem:[%s360] sm:$0xff]
        %v398 = vld [vmem:[%s373] sm:$0x1]
        %vm399 = vcmask 261120
        %v401 = vsel %vm399, %v393, 0
        %v404 = vsel %vm399, %v394, 0
        %v407 = vsel %vm399, %v395, 0
        %v410 = vsel %vm399, %v396, 0
        %v413 = vsel %vm399, %v397, 0
        %415 = vmatprep.subr.mxu0 0.0
        %416 = vmatpush1.xpose.msra.mxu0 %v413
        %417 = vmatprep.subr.mxu0 0.0
        %418 = vmatpush1.xpose.msra.mxu0 0.0
        %419 = vmatprep.subr.mxu0 0.0
        %420 = vmatpush1.xpose.msra.mxu0 0.0
        %421 = vmatprep.subr.mxu0 0.0
        %422 = vmatpush1.xpose.msra.mxu0 0.0
        %423 = vmatprep.subr.mxu0 0.0
        %424 = vmatpush1.xpose.msra.mxu0 0.0
        %425 = vmatprep.subr.mxu0 0.0
        %426 = vmatpush1.xpose.msra.mxu0 0.0
        %427 = vmatprep.subr.mxu0 0.0
        %428 = vmatpush1.xpose.msra.mxu0 0.0
        %429 = vmatprep.subr.mxu0 0.0
        %430 = vmatpush1.xpose.msra.mxu0 0.0
        %431 = vmatprep.subr.mxu0 0.0
        %432 = vmatpush1.xpose.msra.mxu0 0.0
        %433 = vmatprep.subr.mxu0 0.0
        %434 = vmatpush1.xpose.msra.mxu0 0.0
        %435 = vmatprep.subr.mxu0 0.0
        %436 = vmatpush1.xpose.msra.mxu0 0.0
        %437 = vmatprep.subr.mxu0 0.0
        %438 = vmatpush1.xpose.msra.mxu0 0.0
        %439 = vmatprep.subr.mxu0 0.0
        %440 = vmatpush1.xpose.msra.mxu0 0.0
        %441 = vmatprep.subr.mxu0 0.0
        %442 = vmatpush1.xpose.msra.mxu0 0.0
        %443 = vmatprep.subr.mxu0 0.0
        %444 = vmatpush1.xpose.msra.mxu0 0.0
        %445 = vmatprep.subr.mxu0 0.0
        %446 = vmatpush1.xpose.msra.mxu0 0.0
        %447 = vmatprep.subr.mxu0 0.0
        %448 = vmatpush1.xpose.msra.mxu0 0.0
        %449 = vmatprep.subr.mxu0 0.0
        %450 = vmatpush1.xpose.msra.mxu0 0.0
        %451 = vmatprep.subr.mxu0 0.0
        %452 = vmatpush1.xpose.msra.mxu0 0.0
        %453 = vmatprep.subr.mxu0 0.0
        %454 = vmatpush1.xpose.msra.mxu0 0.0
        %455 = vmatprep.subr.mxu0 0.0
        %456 = vmatpush1.xpose.msra.mxu0 0.0
        %457 = vmatprep.subr.mxu0 0.0
        %458 = vmatpush1.xpose.msra.mxu0 0.0
        %459 = vmatprep.subr.mxu0 0.0
        %460 = vmatpush1.xpose.msra.mxu0 0.0
        %461 = vmatprep.subr.mxu0 0.0
        %462 = vmatpush1.xpose.msra.mxu0 0.0
        %463 = vmatprep.subr.mxu0 0.0
        %464 = vmatpush1.xpose.msra.mxu0 0.0
        %465 = vmatprep.subr.mxu0 0.0
        %466 = vmatpush1.xpose.msra.mxu0 0.0
        %467 = vmatprep.subr.mxu0 0.0
        %468 = vmatpush1.xpose.msra.mxu0 0.0
        %469 = vmatprep.subr.mxu0 0.0
        %470 = vmatpush1.xpose.msra.mxu0 0.0
        %471 = vmatprep.subr.mxu0 0.0
        %472 = vmatpush1.xpose.msra.mxu0 0.0
        %473 = vmatprep.subr.mxu0 0.0
        %474 = vmatpush1.xpose.msra.mxu0 0.0
        %475 = vmatprep.subr.mxu0 0.0
        %476 = vmatpush1.xpose.msra.mxu0 0.0
        %477 = vmatprep.subr.mxu0 0.0
        %478 = vmatpush1.xpose.msra.mxu0 0.0
        %479 = vmatprep.mubr.f32.mxu0 0.0
        %480 = vmatmul.mubr.f32.gmra.mrb[0].mxu0 %v401
        %v481 = vpop.f32.mrb[0].mxu0
        %v482 = vadd.f32 0.0, %v481
        %v483 = vpop.f32.mrb[0].mxu0
        %484 = vmatprep.mubr.f32.mxu0 0.0
        %485 = vmatmul.mubr.f32.gmra.mrb[0].mxu0 %v404
        %v486 = vpop.f32.mrb[0].mxu0
        %v487 = vadd.f32 0.0, %v486
        %v488 = vpop.f32.mrb[0].mxu0
        %489 = vmatprep.mubr.f32.mxu0 0.0
        %490 = vmatmul.mubr.f32.gmra.mrb[0].mxu0 %v407
        %v491 = vpop.f32.mrb[0].mxu0
        %v492 = vadd.f32 0.0, %v491
        %v493 = vpop.f32.mrb[0].mxu0
        %494 = vmatprep.mubr.f32.mxu0 0.0
        %495 = vmatmul.mubr.f32.gmra.mrb[0].mxu0 %v410
        %v496 = vpop.f32.mrb[0].mxu0
        %v497 = vadd.f32 0.0, %v496
        %v498 = vpop.f32.mrb[0].mxu0
        %499 = vdwg.mxu0
        %v500 = vmul.f32 %v482, 0.17677669
        %v501 = vmul.f32 %v487, 0.17677669
        %v502 = vmul.f32 %v492, 0.17677669
        %v503 = vmul.f32 %v497, 0.17677669
        %v505 = vlaneseq
        %v506 = vshrl.u32 %v505, 7
        %v507 = vsub.s32 0, %v506
        %v508 = vrot.slane %v398, %v507
        %v510 = vadd.f32 %v500, %v508
        %v511 = vadd.f32 %v501, %v508
        %v512 = vadd.f32 %v502, %v508
        %v513 = vadd.f32 %v503, %v508
        %v514 = vld [vmem:[#allocation2] sm:$0xff]
        %v515 = vld [vmem:[#allocation2 + $0x8] sm:$0xff]
        %v516 = vld [vmem:[#allocation2 + $0x10] sm:$0xff]
        %v517 = vld [vmem:[#allocation2 + $0x18] sm:$0xff]
        %vm518 = vcmask 64512
        %v519 = vsel %vm518, %v510, -inf
        %520 = vmax.xlane.f32.xlu0 %v519
        %v521 = vpop.xlane.xlu0 %520
        %v522 = vsel %vm518, %v511, -inf
        %523 = vmax.xlane.f32.xlu0 %v522
        %v524 = vpop.xlane.xlu0 %523
        %v525 = vsel %vm518, %v512, -inf
        %526 = vmax.xlane.f32.xlu0 %v525
        %v527 = vpop.xlane.xlu0 %526
        %v528 = vsel %vm518, %v513, -inf
        %529 = vmax.xlane.f32.xlu0 %v528
        %v530 = vpop.xlane.xlu0 %529
        %v531 = vmax.f32 %v514, %v521
        %v532 = vmax.f32 %v515, %v524
        %v533 = vmax.f32 %v516, %v527
        %v534 = vmax.f32 %v517, %v530
        %v535 = vsub.f32 %v514, %v531
        %v536 = vsub.f32 %v515, %v532
        %v537 = vsub.f32 %v516, %v533
        %v538 = vsub.f32 %v517, %v534
        %v539 = vmul.f32 %v535, 1.442695
        %v540 = vpow.pop %v539
        %v541 = vmul.f32 %v536, 1.442695
        %v542 = vpow.pop %v541
        %v543 = vmul.f32 %v537, 1.442695
        %v544 = vpow.pop %v543
        %v545 = vmul.f32 %v538, 1.442695
        %v546 = vpow.pop %v545
        %548 = vset.pattern.permute.xlu0 0
        %549 = vperm.xlu0 %548, %v531
        %v550 = vpop.permute.xlu0 %549
        %553 = vset.pattern.permute.xlu0 0
        %554 = vperm.xlu0 %553, %v532
        %v555 = vpop.permute.xlu0 %554
        %558 = vset.pattern.permute.xlu0 0
        %559 = vperm.xlu0 %558, %v533
        %v560 = vpop.permute.xlu0 %559
        %563 = vset.pattern.permute.xlu0 0
        %564 = vperm.xlu0 %563, %v534
        %v565 = vpop.permute.xlu0 %564
        %v567 = vsub.f32 %v510, %v550
        %v568 = vsub.f32 %v511, %v555
        %v569 = vsub.f32 %v512, %v560
        %v570 = vsub.f32 %v513, %v565
        %v571 = vmul.f32 %v567, 1.442695
        %v572 = vpow.pop %v571
        %v573 = vmul.f32 %v568, 1.442695
        %v574 = vpow.pop %v573
        %v575 = vmul.f32 %v569, 1.442695
        %v576 = vpow.pop %v575
        %v577 = vmul.f32 %v570, 1.442695
        %v578 = vpow.pop %v577
        %v579 = vld [vmem:[#allocation3] sm:$0xff]
        %v580 = vld [vmem:[#allocation3 + $0x8] sm:$0xff]
        %v581 = vld [vmem:[#allocation3 + $0x10] sm:$0xff]
        %v582 = vld [vmem:[#allocation3 + $0x18] sm:$0xff]
        %v583 = vmul.f32 %v540, %v579
        %v584 = vmul.f32 %v542, %v580
        %v585 = vmul.f32 %v544, %v581
        %v586 = vmul.f32 %v546, %v582
        %v587 = vsel %vm518, %v572, 0.0
        %588 = vadd.xlane.f32.xlu0 %v587
        %v589 = vpop.xlane.xlu0 %588
        %v590 = vsel %vm518, %v574, 0.0
        %591 = vadd.xlane.f32.xlu0 %v590
        %v592 = vpop.xlane.xlu0 %591
        %v593 = vsel %vm518, %v576, 0.0
        %594 = vadd.xlane.f32.xlu0 %v593
        %v595 = vpop.xlane.xlu0 %594
        %v596 = vsel %vm518, %v578, 0.0
        %597 = vadd.xlane.f32.xlu0 %v596
        %v598 = vpop.xlane.xlu0 %597
        %v599 = vadd.f32 %v583, %v589
        %v600 = vadd.f32 %v584, %v592
        %v601 = vadd.f32 %v585, %v595
        %v602 = vadd.f32 %v586, %v598
        %vm603 = vcmask 7168
        %604 = vst.msk [vmem:[#allocation3] sm:$0xff] %vm603, %v599
        %605 = vst.msk [vmem:[#allocation3 + $0x8] sm:$0xff] %vm603, %v600
        %606 = vst.msk [vmem:[#allocation3 + $0x10] sm:$0xff] %vm603, %v601
        %607 = vst.msk [vmem:[#allocation3 + $0x18] sm:$0xff] %vm603, %v602
        %v608 = vld [vmem:[#allocation4] sm:$0xff]
        %v609 = vld [vmem:[#allocation4 + $0x8] sm:$0xff]
        %v610 = vld [vmem:[#allocation4 + $0x10] sm:$0xff]
        %v611 = vld [vmem:[#allocation4 + $0x18] sm:$0xff]
        %613 = vset.pattern.permute.xlu0 0
        %614 = vperm.xlu0 %613, %v540
        %v615 = vpop.permute.xlu0 %614
        %618 = vset.pattern.permute.xlu0 0
        %619 = vperm.xlu0 %618, %v542
        %v620 = vpop.permute.xlu0 %619
        %623 = vset.pattern.permute.xlu0 0
        %624 = vperm.xlu0 %623, %v544
        %v625 = vpop.permute.xlu0 %624
        %628 = vset.pattern.permute.xlu0 0
        %629 = vperm.xlu0 %628, %v546
        %v630 = vpop.permute.xlu0 %629
        %v632 = vmul.f32 %v615, %v608
        %v633 = vmul.f32 %v620, %v609
        %v634 = vmul.f32 %v625, %v610
        %v635 = vmul.f32 %v630, %v611
        %v636 = vld [vmem:[%s367] sm:$0xff]
        %v638 = vsel %vm518, %v572, 0
        %v641 = vsel %vm518, %v574, 0
        %v644 = vsel %vm518, %v576, 0
        %v647 = vsel %vm518, %v578, 0
        %649 = vmatprep.subr.mxu0 0.0
        %650 = vmatpush1.msra.mxu0 %v636
        %651 = vmatprep.subr.mxu0 0.0
        %652 = vmatpush1.msra.mxu0 0.0
        %653 = vmatprep.subr.mxu0 0.0
        %654 = vmatpush1.msra.mxu0 0.0
        %655 = vmatprep.subr.mxu0 0.0
        %656 = vmatpush1.msra.mxu0 0.0
        %657 = vmatprep.subr.mxu0 0.0
        %658 = vmatpush1.msra.mxu0 0.0
        %659 = vmatprep.subr.mxu0 0.0
        %660 = vmatpush1.msra.mxu0 0.0
        %661 = vmatprep.subr.mxu0 0.0
        %662 = vmatpush1.msra.mxu0 0.0
        %663 = vmatprep.subr.mxu0 0.0
        %664 = vmatpush1.msra.mxu0 0.0
        %665 = vmatprep.subr.mxu0 0.0
        %666 = vmatpush1.msra.mxu0 0.0
        %667 = vmatprep.subr.mxu0 0.0
        %668 = vmatpush1.msra.mxu0 0.0
        %669 = vmatprep.subr.mxu0 0.0
        %670 = vmatpush1.msra.mxu0 0.0
        %671 = vmatprep.subr.mxu0 0.0
        %672 = vmatpush1.msra.mxu0 0.0
        %673 = vmatprep.subr.mxu0 0.0
        %674 = vmatpush1.msra.mxu0 0.0
        %675 = vmatprep.subr.mxu0 0.0
        %676 = vmatpush1.msra.mxu0 0.0
        %677 = vmatprep.subr.mxu0 0.0
        %678 = vmatpush1.msra.mxu0 0.0
        %679 = vmatprep.subr.mxu0 0.0
        %680 = vmatpush1.msra.mxu0 0.0
        %681 = vmatprep.subr.mxu0 0.0
        %682 = vmatpush1.msra.mxu0 0.0
        %683 = vmatprep.subr.mxu0 0.0
        %684 = vmatpush1.msra.mxu0 0.0
        %685 = vmatprep.subr.mxu0 0.0
        %686 = vmatpush1.msra.mxu0 0.0
        %687 = vmatprep.subr.mxu0 0.0
        %688 = vmatpush1.msra.mxu0 0.0
        %689 = vmatprep.subr.mxu0 0.0
        %690 = vmatpush1.msra.mxu0 0.0
        %691 = vmatprep.subr.mxu0 0.0
        %692 = vmatpush1.msra.mxu0 0.0
        %693 = vmatprep.subr.mxu0 0.0
        %694 = vmatpush1.msra.mxu0 0.0
        %695 = vmatprep.subr.mxu0 0.0
        %696 = vmatpush1.msra.mxu0 0.0
        %697 = vmatprep.subr.mxu0 0.0
        %698 = vmatpush1.msra.mxu0 0.0
        %699 = vmatprep.subr.mxu0 0.0
        %700 = vmatpush1.msra.mxu0 0.0
        %701 = vmatprep.subr.mxu0 0.0
        %702 = vmatpush1.msra.mxu0 0.0
        %703 = vmatprep.subr.mxu0 0.0
        %704 = vmatpush1.msra.mxu0 0.0
        %705 = vmatprep.subr.mxu0 0.0
        %706 = vmatpush1.msra.mxu0 0.0
        %707 = vmatprep.subr.mxu0 0.0
        %708 = vmatpush1.msra.mxu0 0.0
        %709 = vmatprep.subr.mxu0 0.0
        %710 = vmatpush1.msra.mxu0 0.0
        %711 = vmatprep.subr.mxu0 0.0
        %712 = vmatpush1.msra.mxu0 0.0
        %713 = vmatprep.mubr.f32.mxu0 0.0
        %714 = vmatmul.mubr.f32.gmra.mrb[0].mxu0 %v638
        %v715 = vpop.f32.mrb[0].mxu0
        %v716 = vadd.f32 0.0, %v715
        %v717 = vpop.f32.mrb[0].mxu0
        %718 = vmatprep.mubr.f32.mxu0 0.0
        %719 = vmatmul.mubr.f32.gmra.mrb[0].mxu0 %v641
        %v720 = vpop.f32.mrb[0].mxu0
        %v721 = vadd.f32 0.0, %v720
        %v722 = vpop.f32.mrb[0].mxu0
        %723 = vmatprep.mubr.f32.mxu0 0.0
        %724 = vmatmul.mubr.f32.gmra.mrb[0].mxu0 %v644
        %v725 = vpop.f32.mrb[0].mxu0
        %v726 = vadd.f32 0.0, %v725
        %v727 = vpop.f32.mrb[0].mxu0
        %728 = vmatprep.mubr.f32.mxu0 0.0
        %729 = vmatmul.mubr.f32.gmra.mrb[0].mxu0 %v647
        %v730 = vpop.f32.mrb[0].mxu0
        %v731 = vadd.f32 0.0, %v730
        %v732 = vpop.f32.mrb[0].mxu0
        %733 = vdwg.mxu0
        %v734 = vadd.f32 %v632, %v716
        %v735 = vadd.f32 %v633, %v721
        %v736 = vadd.f32 %v634, %v726
        %v737 = vadd.f32 %v635, %v731
        %738 = vst.msk [vmem:[#allocation4] sm:$0xff] %vm399, %v734
        %739 = vst.msk [vmem:[#allocation4 + $0x8] sm:$0xff] %vm399, %v735
        %740 = vst.msk [vmem:[#allocation4 + $0x10] sm:$0xff] %vm399, %v736
        %741 = vst.msk [vmem:[#allocation4 + $0x18] sm:$0xff] %vm399, %v737
        %742 = vst.msk [vmem:[#allocation2] sm:$0xff] %vm603, %v531
        %743 = vst.msk [vmem:[#allocation2 + $0x8] sm:$0xff] %vm603, %v532
        %744 = vst.msk [vmem:[#allocation2 + $0x10] sm:$0xff] %vm603, %v533
        %745 = vst.msk [vmem:[#allocation2 + $0x18] sm:$0xff] %vm603, %v534
        // Predicated region
        $region49: #{tpu_custom_call.1} parent=39 // pred_check
          %p746 = pneg %p375
        $region50: #{tpu_custom_call.1} parent=39 // pred_check_branch
          %748 = sbr.rel (%p746) target = $region52
        $region51: #{tpu_custom_call.1} parent=39 // pred_region
          %v749 = vld [vmem:[#allocation3] sm:$0xff]
          %v750 = vld [vmem:[#allocation3 + $0x8] sm:$0xff]
          %v751 = vld [vmem:[#allocation3 + $0x10] sm:$0xff]
          %v752 = vld [vmem:[#allocation3 + $0x18] sm:$0xff]
          %v753 = vrcp.pop %v749
          %v754 = vrcp.pop %v750
          %v755 = vrcp.pop %v751
          %v756 = vrcp.pop %v752
          %v757 = vld [vmem:[#allocation4] sm:$0xff]
          %v758 = vld [vmem:[#allocation4 + $0x8] sm:$0xff]
          %v759 = vld [vmem:[#allocation4 + $0x10] sm:$0xff]
          %v760 = vld [vmem:[#allocation4 + $0x18] sm:$0xff]
          %762 = vset.pattern.permute.xlu0 0
          %763 = vperm.xlu0 %762, %v753
          %v764 = vpop.permute.xlu0 %763
          %767 = vset.pattern.permute.xlu0 0
          %768 = vperm.xlu0 %767, %v754
          %v769 = vpop.permute.xlu0 %768
          %772 = vset.pattern.permute.xlu0 0
          %773 = vperm.xlu0 %772, %v755
          %v774 = vpop.permute.xlu0 %773
          %777 = vset.pattern.permute.xlu0 0
          %778 = vperm.xlu0 %777, %v756
          %v779 = vpop.permute.xlu0 %778
          %v781 = vmul.f32 %v757, %v764
          %v782 = vmul.f32 %v758, %v769
          %v783 = vmul.f32 %v759, %v774
          %v784 = vmul.f32 %v760, %v779
          %785 = vst.msk [vmem:[%s346] sm:$0xff] %vm399, %v781
          %786 = vst.msk [vmem:[%s346 + $0x8] sm:$0xff] %vm399, %v782
          %787 = vst.msk [vmem:[%s346 + $0x10] sm:$0xff] %vm399, %v783
          %788 = vst.msk [vmem:[%s346 + $0x18] sm:$0xff] %vm399, %v784
        $region52: #{tpu_custom_call.1} parent=39 // pred_fallthru
          _
        %s789 = sand.u32 %s191, 1
        %s790 = scalar_lea.sflag [#allocation9], %s789
        %s791 = sand.u32 %s191, 1
        %s792 = smul.addr %s791, 32
        %s793 = scalar_lea.vmem [#allocation10], %s792
        // Predicated region
        $region53: #{tpu_custom_call.1} parent=39 // pred_check
          %p794 = pneg %p201
        $region54: #{tpu_custom_call.1} parent=39 // pred_check_branch
          %796 = sbr.rel (%p794) target = $region56
        $region55: #{tpu_custom_call.1} parent=39 // pred_region
          %s797 = smul.u32 4, %s30
          %s799 = ssub.s32 512, 512
          %800 = vsyncadd %s790, %s799
          %s801 = smul.addr %s29, 4
          %s802 = sadd.s32 %s797, %s801
          %s803 = smul.addr %s802, 128
          %s804 = scalar_lea.hbm %s6, %s803
          %s805 = sshll.u32 %s793, 4
          %s806 = int_to_ptr.vmem [resolvable:$true] %s805
          %811 = dma.vmem_to_hbm [thread:$0]  %s806, 512, %s804, %s790, 128, 128, 8
        $region56: #{tpu_custom_call.1} parent=39 // pred_fallthru
          _
      $region40: #{tpu_custom_call.1} parent=5 // pred_fallthru
        _
      %p812 = scmp.le.s32.totalorder 2, %s19
      // Predicated region
      $region57: #{tpu_custom_call.1} parent=5 // pred_check
        %p813 = pneg %p812
      $region58: #{tpu_custom_call.1} parent=5 // pred_check_branch
        %815 = sbr.rel (%p813) target = $region60
      $region59: #{tpu_custom_call.1} parent=5 // pred_region
        %s816 = ssub.s32 %s19, 2
        // Predicated region
        $region61: #{tpu_custom_call.1} parent=59 // pred_check
          %p817 = pneg %p207
        $region62: #{tpu_custom_call.1} parent=59 // pred_check_branch
          %819 = sbr.rel (%p817) target = $region64
        $region63: #{tpu_custom_call.1} parent=59 // pred_region
          %s820 = sand.u32 %s192, 1
          %s821 = scalar_lea.sflag [#allocation9], %s820
          %s822 = sand.u32 %s192, 1
          %s823 = smul.addr %s822, 32
          %s824 = scalar_lea.vmem [#allocation10], %s823
          %825 = dma.done %s821, 512
        $region64: #{tpu_custom_call.1} parent=59 // pred_fallthru
          _
      $region60: #{tpu_custom_call.1} parent=5 // pred_fallthru
        _
    $region6: #{tpu_custom_call.1} parent=1 // loop_footer
      %s23 = sadd.s32 1, %s19
    $region7: #{tpu_custom_call.1} parent=1 // loop_footer_branch
      %18 = sbr.rel target = $region3
    $region8: #{tpu_custom_call.1} parent=1 // loop_exit
      _
    %826 = vsyncpa [#allocation8], 1
    %s827 = scalar_lea.sflag [#allocation8], 1
    %828 = vsyncpa %s827, 1
    %829 = vsyncpa [#allocation9], 1
    %s830 = scalar_lea.sflag [#allocation9], 1
    %831 = vsyncpa %s830, 1

</llo_original>
